<compile_context>
chip_gen: v5e
topology: v5e:2x2
jax: 0.10.0
libtpu: 0.0.40
codegen_flags: <defaults>
</compile_context>

<pallas_src>
import jax
import jax.numpy as jnp
from jax.experimental import pallas as pl
from jax.experimental.pallas import tpu as pltpu

# Full-f32 matmuls for the init-time fold and the reference check (keeps the
# folded path within 1e-5 of the unfolded math).
jax.config.update("jax_default_matmul_precision", "highest")

# -------------------- model hyper-parameters (from the module) --------------
B = 5
USER_ID_HASH_SIZE = 100
USER_ID_EMBEDDING_DIM = 50
USER_FEATURES_SIZE = 10
ITEM_ID_HASH_SIZE = 200
ITEM_ID_EMBEDDING_DIM = 30
NUM_TASKS = 3
USER_VALUE_WEIGHTS = [0.5, 0.3, 0.2]

_SCORE_LANES = 256   # lane width of the folded-score rows (>= max hash size)
_SLAB_ROWS = 8       # sublane-aligned parameter slab
_OUT_SHAPE = (8, 128)

# The one-hot lane-select gather requires the folded score vectors to fit in
# the slab's lane dimension. Larger tables need the HBM DMA-gather fallback.
assert USER_ID_HASH_SIZE <= _SCORE_LANES
assert ITEM_ID_HASH_SIZE <= _SCORE_LANES


# ------------------------------ Pallas kernel --------------------------------
def ranking_kernel(ids_ref, uf_ref, param_ref, out_ref):
    # ids_ref   : (B, 2) int32  — col 0 = user id, col 1 = item id (pre-modded)
    # uf_ref    : (B, F) f32    — raw user features
    # param_ref : (8, 256) f32  — row 0 [:F]  = folded user-feature weights
    #                              row 1 [:U]  = folded user scores (+ bias)
    #                              row 2 [:I]  = folded item scores
    uid = ids_ref[:, 0:1]                                    # (B, 1) int32
    iid = ids_ref[:, 1:2]                                    # (B, 1) int32

    # user_features contribution: one VPU multiply + one lane reduce.
    w_uf = param_ref[0:1, 0:USER_FEATURES_SIZE]              # (1, F)
    lin = jnp.sum(uf_ref[...] * w_uf, axis=-1, keepdims=True)  # (B, 1)

    # Folded embedding scores via vectorized one-hot lane select (no dynamic
    # VMEM indexing, no scalar gather chain, no scratch stores).
    lanes = jax.lax.broadcasted_iota(jnp.int32, (B, _SCORE_LANES), 1)
    u_row = param_ref[1:2, :]                                # (1, 256)
    i_row = param_ref[2:3, :]                                # (1, 256)
    u_val = jnp.sum(jnp.where(lanes == uid, u_row, 0.0), axis=-1, keepdims=True)
    i_val = jnp.sum(jnp.where(lanes == iid, i_row, 0.0), axis=-1, keepdims=True)

    value = lin + u_val + i_val                              # (B, 1)

    # softmax-weighted mean over the batch:
    # sum(probs * value) / sum(probs) == sum(e * value) / sum(e)
    m = jnp.max(value)
    e = jnp.exp(value - m)
    num = jnp.sum(e * value, keepdims=True)                  # (1, 1)
    den = jnp.sum(e, keepdims=True)                          # (1, 1)

    # Lane-dense (unmasked) output store; wrapper extracts [0, 0].
    out_ref[...] = jnp.broadcast_to(num / den, _OUT_SHAPE)


# ------------------------------ parameter folding -----------------------------
def fold_params(params):
    """One-time, init-side fold of the full linear chain AND the embedding tables.

    value = user_scores[uid] + item_scores[iid] + uf @ w_v_uf
      user_scores = user_emb @ (W_t_ue @ vw) + (b_uf @ W_t_uf + b_t) @ vw
      item_scores = item_emb @ (W_t_ie @ vw)
      w_v_uf      = W_uf @ (W_t_uf @ vw)
    """
    vw = params["vw"]                                        # (T, 1)
    w_v_ue = params["w_t_ue"] @ vw                           # (Du, 1)
    w_v_uf = params["w_uf"] @ (params["w_t_uf"] @ vw)        # (F, 1)
    w_v_ie = params["w_t_ie"] @ vw                           # (Di, 1)
    b_v = ((params["b_uf"] @ params["w_t_uf"] + params["b_t"]) @ vw)[0, 0]

    user_scores = (params["user_emb"] @ w_v_ue)[:, 0] + b_v  # (U,)  bias folded in
    item_scores = (params["item_emb"] @ w_v_ie)[:, 0]        # (I,)

    slab = jnp.zeros((_SLAB_ROWS, _SCORE_LANES), jnp.float32)
    slab = slab.at[0, :USER_FEATURES_SIZE].set(w_v_uf[:, 0])
    slab = slab.at[1, :USER_ID_HASH_SIZE].set(user_scores)
    slab = slab.at[2, :ITEM_ID_HASH_SIZE].set(item_scores)
    return {"param_slab": slab}


# ------------------------------ wrapper ---------------------------------------
def ranking_simulator(user_id, user_features, item_id, folded):
    # Pack ids into one tiny int32 operand; mod guards against out-of-range
    # ids (nn.Embedding contract — no silent OOB reads in the kernel anyway).
    ids = jnp.stack(
        [jnp.asarray(user_id, jnp.int32) % USER_ID_HASH_SIZE,
         jnp.asarray(item_id, jnp.int32) % ITEM_ID_HASH_SIZE],
        axis=1)                                              # (B, 2)

    vmem = pl.BlockSpec(memory_space=pltpu.MemorySpace.VMEM)
    out = pl.pallas_call(
        ranking_kernel,
        out_shape=jax.ShapeDtypeStruct(_OUT_SHAPE, jnp.float32),
        in_specs=[vmem, vmem, vmem],
        out_specs=vmem,
    )(ids, jnp.asarray(user_features, jnp.float32), folded["param_slab"])
    return out[0, 0]   # scalar expected reward over the batch


def init_params(key):
    ks = jax.random.split(key, 7)
    scale = 0.1
    params = {
        # embedding tables
        "user_emb": scale * jax.random.normal(
            ks[0], (USER_ID_HASH_SIZE, USER_ID_EMBEDDING_DIM), jnp.float32),
        "item_emb": scale * jax.random.normal(
            ks[1], (ITEM_ID_HASH_SIZE, ITEM_ID_EMBEDDING_DIM), jnp.float32),
        # user_features_layer: Linear(F -> Du), weight stored as (F, Du)
        "w_uf": scale * jax.random.normal(
            ks[2], (USER_FEATURES_SIZE, USER_ID_EMBEDDING_DIM), jnp.float32),
        "b_uf": scale * jax.random.normal(
            ks[3], (1, USER_ID_EMBEDDING_DIM), jnp.float32),
        # task_arch: Linear(2*Du + Di -> T), weight split column-wise, (in, T)
        "w_t_ue": scale * jax.random.normal(
            ks[4], (USER_ID_EMBEDDING_DIM, NUM_TASKS), jnp.float32),
        "w_t_uf": scale * jax.random.normal(
            ks[5], (USER_ID_EMBEDDING_DIM, NUM_TASKS), jnp.float32),
        "w_t_ie": scale * jax.random.normal(
            ks[6], (ITEM_ID_EMBEDDING_DIM, NUM_TASKS), jnp.float32),
        "b_t": jnp.zeros((1, NUM_TASKS), jnp.float32),
        # fixed user value weights (non-trainable nn.Parameter in torch)
        "vw": jnp.asarray(USER_VALUE_WEIGHTS, jnp.float32).reshape(NUM_TASKS, 1),
    }
    return params


if __name__ == "__main__":
    key = jax.random.PRNGKey(0)
    k_uid, k_iid, k_uf, k_params = jax.random.split(key, 4)

    user_id = jax.random.randint(k_uid, (B,), 0, USER_ID_HASH_SIZE, jnp.int32)
    item_id = jax.random.randint(k_iid, (B,), 0, ITEM_ID_HASH_SIZE, jnp.int32)
    user_features = jax.random.normal(k_uf, (B, USER_FEATURES_SIZE), jnp.float32)

    params = init_params(k_params)
    folded = fold_params(params)   # one-time, init-side fold (free at runtime)

    result = jax.block_until_ready(
        ranking_simulator(user_id, user_features, item_id, folded))

    # sanity check against a pure-JAX reference of the ORIGINAL (unfolded) math
    ue = params["user_emb"][user_id]
    ie = params["item_emb"][item_id]
    uf_t = user_features @ params["w_uf"] + params["b_uf"]
    logits = (ue @ params["w_t_ue"] + uf_t @ params["w_t_uf"]
              + ie @ params["w_t_ie"] + params["b_t"])
    value = (logits @ params["vw"])[:, 0]
    probs = jax.nn.softmax(value)
    ref = jnp.sum(probs * value) / jnp.sum(probs)
    assert jnp.allclose(result, ref, atol=1e-5, rtol=1e-4), (result, ref)

    print("KERNEL_OK")
</pallas_src>

<mosaic_0001>
module attributes {stable_mosaic.version = 11 : i64} {
  func.func @ranking_kernel(%arg0: memref<5x2xi32, #tpu.memory_space<vmem>>, %arg1: memref<5x10xf32, #tpu.memory_space<vmem>>, %arg2: memref<8x256xf32, #tpu.memory_space<vmem>>, %arg3: memref<8x128xf32, #tpu.memory_space<vmem>>) attributes {dimension_semantics = [], scalar_prefetch = 0 : i64, scratch_operands = 0 : i64, tpu.core_type = #tpu.core_type<tc>} {
    %c0 = arith.constant 0 : index
    %c0_0 = arith.constant 0 : index
    %0 = vector.load %arg0[%c0, %c0_0] : memref<5x2xi32, #tpu.memory_space<vmem>>, vector<5x1xi32>
    %c0_1 = arith.constant 0 : index
    %c1 = arith.constant 1 : index
    %1 = vector.load %arg0[%c0_1, %c1] : memref<5x2xi32, #tpu.memory_space<vmem>>, vector<5x1xi32>
    %c0_2 = arith.constant 0 : index
    %c0_3 = arith.constant 0 : index
    %2 = vector.load %arg2[%c0_2, %c0_3] : memref<8x256xf32, #tpu.memory_space<vmem>>, vector<1x10xf32>
    %c0_4 = arith.constant 0 : index
    %c0_5 = arith.constant 0 : index
    %3 = vector.load %arg1[%c0_4, %c0_5] : memref<5x10xf32, #tpu.memory_space<vmem>>, vector<5x10xf32>
    %4 = vector.broadcast %2 : vector<1x10xf32> to vector<5x10xf32>
    %5 = arith.mulf %3, %4 : vector<5x10xf32>
    %cst = arith.constant dense<0.000000e+00> : vector<5xf32>
    %6 = vector.multi_reduction <add>, %5, %cst [1] : vector<5x10xf32> to vector<5xf32>
    %7 = vector.shape_cast %6 : vector<5xf32> to vector<5x1xf32>
    %8 = tpu.iota {dimensions = array<i32: 1>} : vector<5x256xi32>
    %c1_6 = arith.constant 1 : index
    %c0_7 = arith.constant 0 : index
    %9 = vector.load %arg2[%c1_6, %c0_7] : memref<8x256xf32, #tpu.memory_space<vmem>>, vector<1x256xf32>
    %c2 = arith.constant 2 : index
    %c0_8 = arith.constant 0 : index
    %10 = vector.load %arg2[%c2, %c0_8] : memref<8x256xf32, #tpu.memory_space<vmem>>, vector<1x256xf32>
    %11 = vector.broadcast %0 : vector<5x1xi32> to vector<5x256xi32>
    %12 = arith.cmpi eq, %8, %11 : vector<5x256xi32>
    %cst_9 = arith.constant 0.000000e+00 : f32
    %13 = vector.shape_cast %9 : vector<1x256xf32> to vector<1x256xf32>
    %14 = vector.broadcast %13 : vector<1x256xf32> to vector<5x256xf32>
    %15 = vector.broadcast %cst_9 : f32 to vector<5x256xf32>
    %16 = arith.select %12, %14, %15 : vector<5x256xi1>, vector<5x256xf32>
    %cst_10 = arith.constant dense<0.000000e+00> : vector<5xf32>
    %17 = vector.multi_reduction <add>, %16, %cst_10 [1] : vector<5x256xf32> to vector<5xf32>
    %18 = vector.shape_cast %17 : vector<5xf32> to vector<5x1xf32>
    %19 = vector.broadcast %1 : vector<5x1xi32> to vector<5x256xi32>
    %20 = arith.cmpi eq, %8, %19 : vector<5x256xi32>
    %cst_11 = arith.constant 0.000000e+00 : f32
    %21 = vector.shape_cast %10 : vector<1x256xf32> to vector<1x256xf32>
    %22 = vector.broadcast %21 : vector<1x256xf32> to vector<5x256xf32>
    %23 = vector.broadcast %cst_11 : f32 to vector<5x256xf32>
    %24 = arith.select %20, %22, %23 : vector<5x256xi1>, vector<5x256xf32>
    %cst_12 = arith.constant dense<0.000000e+00> : vector<5xf32>
    %25 = vector.multi_reduction <add>, %24, %cst_12 [1] : vector<5x256xf32> to vector<5xf32>
    %26 = vector.shape_cast %25 : vector<5xf32> to vector<5x1xf32>
    %27 = arith.addf %7, %18 : vector<5x1xf32>
    %28 = arith.addf %27, %26 : vector<5x1xf32>
    %29 = vector.shape_cast %28 : vector<5x1xf32> to vector<1x5x1xf32>
    %cst_13 = arith.constant dense<0xFF800000> : vector<1xf32>
    %30 = vector.multi_reduction <maximumf>, %29, %cst_13 [1, 2] : vector<1x5x1xf32> to vector<1xf32>
    %31 = vector.shape_cast %30 : vector<1xf32> to vector<1x1x1xf32>
    %32 = vector.extract %31[0, 0, 0] : f32 from vector<1x1x1xf32>
    %33 = vector.broadcast %32 : f32 to vector<5x1xf32>
    %34 = arith.subf %28, %33 : vector<5x1xf32>
    %35 = math.exp %34 : vector<5x1xf32>
    %36 = arith.mulf %35, %28 : vector<5x1xf32>
    %37 = vector.shape_cast %36 : vector<5x1xf32> to vector<1x5x1xf32>
    %cst_14 = arith.constant dense<0.000000e+00> : vector<1xf32>
    %38 = vector.multi_reduction <add>, %37, %cst_14 [1, 2] : vector<1x5x1xf32> to vector<1xf32>
    %39 = vector.shape_cast %38 : vector<1xf32> to vector<1x1x1xf32>
    %40 = vector.extract %39[0, 0, 0] : f32 from vector<1x1x1xf32>
    %41 = vector.broadcast %40 : f32 to vector<1x1xf32>
    %42 = vector.shape_cast %35 : vector<5x1xf32> to vector<1x5x1xf32>
    %cst_15 = arith.constant dense<0.000000e+00> : vector<1xf32>
    %43 = vector.multi_reduction <add>, %42, %cst_15 [1, 2] : vector<1x5x1xf32> to vector<1xf32>
    %44 = vector.shape_cast %43 : vector<1xf32> to vector<1x1x1xf32>
    %45 = vector.extract %44[0, 0, 0] : f32 from vector<1x1x1xf32>
    %46 = vector.broadcast %45 : f32 to vector<1x1xf32>
    %47 = arith.divf %41, %46 : vector<1x1xf32>
    %48 = vector.shape_cast %47 : vector<1x1xf32> to vector<1x1xf32>
    %49 = vector.broadcast %48 : vector<1x1xf32> to vector<8x128xf32>
    %c0_16 = arith.constant 0 : index
    %c0_17 = arith.constant 0 : index
    %50 = vector.load %arg3[%c0_16, %c0_17] : memref<8x128xf32, #tpu.memory_space<vmem>>, vector<8x128xf32>
    tpu.vector_store %arg3[%c0_16, %c0_17], %49 {strides = array<i32>} : memref<8x128xf32, #tpu.memory_space<vmem>>, vector<8x128xf32>,
    return
  }
}

</mosaic_0001>

<llo_original>
// kernel: tpu_custom_call.1
$region0: #{tpu_custom_call.1}
  #allocation0 [shape = 'u32[]', space=smem, size = 0x4, offset = 0x4, fixed_abs, tag = 'smem constant byte address 0x4 - core index']
  #allocation1 [shape = 'u32[72,128]{1,0:T(1,128)}', space=vmem, size = 0x9000, scoped, tag = 'internal scratch']
  %s0 = inlined_call_operand.vmem [shape: s32[5,2], index: 0, kind: input, shape index: {}]
  %s1 = inlined_call_operand.vmem [shape: f32[5,10], index: 1, kind: input, shape index: {}]
  %s2 = inlined_call_operand.hbm [shape: f32[8,256], index: 2, kind: input, shape index: {}]
  %s3 = inlined_call_operand.hbm [shape: f32[8,128], index: 3, kind: output, shape index: {}]
  %s4 = sld [smem:[#allocation0]]
  $region26: #{tpu_custom_call.1} parent=0
    _
  %s6 = ssub.s32 1, %s4
  %s7 = scalar_select 0, %s6, %s4
  $region1: #{tpu_custom_call.1} parent=0
    #allocation2 [shape = 'u8[8192]{0}', space=vmem, size = 0x2000, scoped, tag = 'input window, operand 2, single buffered']
    #allocation3 [shape = 's32[1]{0}', space=sflag, size = 0x4, scoped, tag = 'scoped memory for tpu_custom_call.1']
    #allocation4 [shape = 's32[1]{0}', space=sflag, size = 0x4, scoped, tag = 'scoped memory for tpu_custom_call.1']
    #allocation5 [shape = 'u8[4096]{0}', space=vmem, size = 0x1000, scoped, tag = 'output window, operand 0, single buffered']
    %8 = vsyncpa [#allocation3], 0
    %9 = vsyncpa [#allocation4], 0
    // Predicated region
    $region2: #{tpu_custom_call.1} parent=1 // pred_check
      _
    $region3: #{tpu_custom_call.1} parent=1 // pred_check_branch
      %11 = sbr.rel (0) target = $region5
    $region4: #{tpu_custom_call.1} parent=1 // pred_region
      _
    $region5: #{tpu_custom_call.1} parent=1 // pred_fallthru
      _
    // Predicated region
    $region6: #{tpu_custom_call.1} parent=1 // pred_check
      _
    $region7: #{tpu_custom_call.1} parent=1 // pred_check_branch
      %13 = sbr.rel (0) target = $region9
    $region8: #{tpu_custom_call.1} parent=1 // pred_region
      _
    $region9: #{tpu_custom_call.1} parent=1 // pred_fallthru
      _
    // Predicated region
    $region10: #{tpu_custom_call.1} parent=1 // pred_check
      _
    $region11: #{tpu_custom_call.1} parent=1 // pred_check_branch
      %15 = sbr.rel (0) target = $region13
    $region12: #{tpu_custom_call.1} parent=1 // pred_region
      %17 = vsyncadd [#allocation3], 0
      %s19 = sshll.u32 %s2, 4
      %s20 = int_to_ptr.hbm [resolvable:$true] %s19
      %s21 = sshll.u32 [#allocation2], 4
      %s22 = int_to_ptr.vmem [resolvable:$true] %s21
      %24 = dma.hbm_to_vmem [thread:$0]  %s20, 256, %s22, [#allocation3]
    $region13: #{tpu_custom_call.1} parent=1 // pred_fallthru
      _
    // Predicated region
    $region14: #{tpu_custom_call.1} parent=1 // pred_check
      _
    $region15: #{tpu_custom_call.1} parent=1 // pred_check_branch
      %26 = sbr.rel (0) target = $region17
    $region16: #{tpu_custom_call.1} parent=1 // pred_region
      %28 = dma.done [#allocation3], 256
    $region17: #{tpu_custom_call.1} parent=1 // pred_fallthru
      _
    %v29 = vld [vmem:[%s0] sm:$0x1f]
    %v30 = vld [vmem:[#allocation2] ss:$0 sm:$0xff]
    %v31 = vld [vmem:[%s1] sm:$0x1f]
    %v32 = vmul.f32 %v31, %v30
    %vm33 = vcmask 77824
    %v34 = vsel %vm33, %v32, 0.0
    %35 = vadd.xlane.f32.xlu0 %v34
    %v36 = vpop.xlane.xlu0 %35
    %v37 = vlaneseq
    %v38 = vand.u32 %v37, 127
    %v39 = vadd.s32 %v38, 128
    %s40 = scalar_lea.vmem [#allocation2], 1
    %v41 = vld [vmem:[%s40] ss:$8 sm:$0x3]
    %s42 = scalar_lea.vmem [#allocation2], 2
    %v43 = vld [vmem:[%s42] ss:$8 sm:$0x3]
    %44 = vset.pattern.permute.xlu0 0
    %45 = vperm.xlu0 %44, %v29
    %v46 = vpop.permute.xlu0 %45
    %vm47 = vcmp.eq.s32.totalorder %v38, %v46
    %vm48 = vcmp.eq.s32.totalorder %v39, %v46
    %v50 = vperm.slane %v41, 0
    %v51 = vperm.slane %v41, 1
    %v54 = vsel %vm47, %v50, 0.0
    %v55 = vsel %vm48, %v51, 0.0
    %vm56 = vcmask 1044480
    %v57 = vsel %vm56, %v54, 0.0
    %v58 = vsel %vm56, %v55, 0.0
    %v59 = vadd.f32 %v57, %v58
    %60 = vadd.xlane.f32.xlu0 %v59
    %v61 = vpop.xlane.xlu0 %60
    %62 = vset.pattern.permute.xlu0 1
    %63 = vperm.xlu0 %62, %v29
    %v64 = vpop.permute.xlu0 %63
    %vm65 = vcmp.eq.s32.totalorder %v38, %v64
    %vm66 = vcmp.eq.s32.totalorder %v39, %v64
    %v68 = vperm.slane %v43, 0
    %v69 = vperm.slane %v43, 1
    %v72 = vsel %vm65, %v68, 0.0
    %v73 = vsel %vm66, %v69, 0.0
    %v74 = vsel %vm56, %v72, 0.0
    %v75 = vsel %vm56, %v73, 0.0
    %v76 = vadd.f32 %v74, %v75
    %77 = vadd.xlane.f32.xlu0 %v76
    %v78 = vpop.xlane.xlu0 %77
    %v79 = vadd.f32 %v36, %v61
    %v80 = vadd.f32 %v79, %v78
    %v81 = vsel %vm56, %v80, -inf
    %v82 = vrot.slane %v81, 4
    %v83 = vmax.f32 %v81, %v82
    %v84 = vrot.slane %v83, 2
    %v85 = vmax.f32 %v83, %v84
    %v86 = vrot.slane %v85, 1
    %v87 = vmax.f32 %v85, %v86
    %s88 = vtos %v87
    %v89 = vstv %s88
    %v90 = vsub.f32 %v80, %v89
    %v91 = vmul.f32 %v90, 1.442695
    %v92 = vpow.pop %v91
    %v93 = vmul.f32 %v92, %v80
    %vm94 = vcmask 4096
    %v95 = vsel %vm94, %v93, 0.0
    %96 = vadd.xlane.f32.xlu0 %v95
    %v97 = vpop.xlane.xlu0 %96
    %v98 = vrot.slane %v97, 4
    %v99 = vadd.f32 %v97, %v98
    %v100 = vrot.slane %v99, 2
    %v101 = vadd.f32 %v99, %v100
    %v102 = vrot.slane %v101, 1
    %v103 = vadd.f32 %v101, %v102
    %s104 = vtos %v103
    %v105 = vstv %s104
    %v106 = vsel %vm94, %v92, 0.0
    %107 = vadd.xlane.f32.xlu0 %v106
    %v108 = vpop.xlane.xlu0 %107
    %v109 = vrot.slane %v108, 4
    %v110 = vadd.f32 %v108, %v109
    %v111 = vrot.slane %v110, 2
    %v112 = vadd.f32 %v110, %v111
    %v113 = vrot.slane %v112, 1
    %v114 = vadd.f32 %v112, %v113
    %s115 = vtos %v114
    %v116 = vstv %s115
    %v117 = vrcp.pop %v116
    %v118 = vmul.f32 %v116, %v117
    %v119 = vsub.f32 1.0, %v118
    %v120 = vmul.f32 %v117, %v119
    %v121 = vadd.f32 %v117, %v120
    %vm122 = vweird.f32 %v116
    %vm123 = vweird.f32 %v117
    %vm124 = vmor %vm122, %vm123
    %v125 = vsel %vm124, %v117, %v121
    %v126 = vand.u32 2147483647, %v116
    %vm127 = vcmp.eq.f32.partialorder %v126, 8.507059e+37
    %v128 = vand.u32 %v116, 2147483648
    %v129 = vor.u32 1.1754944e-38, %v128
    %v130 = vsel %vm127, %v129, %v125
    %v131 = vmul.f32 %v105, %v130
    %132 = vst [vmem:[#allocation5] sm:$0xff] %v131
    // Predicated region
    $region18: #{tpu_custom_call.1} parent=1 // pred_check
      _
    $region19: #{tpu_custom_call.1} parent=1 // pred_check_branch
      %134 = sbr.rel (0) target = $region21
    $region20: #{tpu_custom_call.1} parent=1 // pred_region
      %136 = vsyncadd [#allocation4], 0
      %s138 = sshll.u32 [#allocation5], 4
      %s139 = int_to_ptr.vmem [resolvable:$true] %s138
      %s140 = sshll.u32 %s3, 4
      %s141 = int_to_ptr.hbm [resolvable:$true] %s140
      %143 = dma.vmem_to_hbm [thread:$0]  %s139, 128, %s141, [#allocation4]
    $region21: #{tpu_custom_call.1} parent=1 // pred_fallthru
      _
    // Predicated region
    $region22: #{tpu_custom_call.1} parent=1 // pred_check
      _
    $region23: #{tpu_custom_call.1} parent=1 // pred_check_branch
      %145 = sbr.rel (0) target = $region25
    $region24: #{tpu_custom_call.1} parent=1 // pred_region
      %147 = dma.done [#allocation4], 128
    $region25: #{tpu_custom_call.1} parent=1 // pred_fallthru
      _
    %148 = vsyncpa [#allocation3], 1
    %149 = vsyncpa [#allocation4], 1

</llo_original>
